<compile_context>
chip_gen: v6e
topology: v6e:2x2x1
jax: 0.10.0
libtpu: 0.0.40
codegen_flags: <defaults>
</compile_context>

<pallas_src>
import jax
import jax.numpy as jnp
from jax.experimental import pallas as pl
from jax.experimental.pallas import tpu as pltpu

_NEG_PAD = -1e30  # bias for lane-padded (fake) classes: excluded from softmax


def classifier_head_kernel(x_ref, w1_ref, b1_ref, w2_ref, b2_ref,
                           w3_ref, b3_ref, o_ref):
    mxu_dtype = w1_ref.dtype

    # Contiguous (tb, D_in) CLS tile, already in the MXU stream dtype.
    x = x_ref[...].astype(mxu_dtype)

    # dense1 + ReLU   (dropout1 == identity in eval mode)
    h = jnp.dot(x, w1_ref[...],
                preferred_element_type=jnp.float32) + b1_ref[...]
    h = jnp.maximum(h, 0.0)

    # dense2 + ReLU   (dropout2 == identity in eval mode)
    h = jnp.dot(h.astype(mxu_dtype), w2_ref[...],
                preferred_element_type=jnp.float32) + b2_ref[...]
    h = jnp.maximum(h, 0.0)

    # dense3 -> logits (lane-padded; padded columns have bias = -1e30 so their
    # exp underflows to exactly 0 and the valid-class log_softmax is exact).
    logits = jnp.dot(h.astype(mxu_dtype), w3_ref[...],
                     preferred_element_type=jnp.float32) + b3_ref[...]

    # log_softmax over classes (numerically stable), all in f32.
    m = jnp.max(logits, axis=-1, keepdims=True)
    shifted = logits - m
    lse = jnp.log(jnp.sum(jnp.exp(shifted), axis=-1, keepdims=True))
    o_ref[...] = (shifted - lse).astype(o_ref.dtype)


def _pick_batch_tile(B, block_b, sublane=8):
    """Sublane-aligned batch tile; prefer >= 2 grid steps (v7x megacore)."""
    tb = max(1, min(block_b, B))
    tb = ((tb + sublane - 1) // sublane) * sublane
    if B > sublane and pl.cdiv(B, tb) < 2:
        tb = ((pl.cdiv(B, 2) + sublane - 1) // sublane) * sublane
    return tb


def _vmem_limit_bytes():
    kind = ""
    try:
        kind = jax.devices()[0].device_kind.lower()
    except Exception:
        pass
    if "v7" in kind:
        return 48 * 1024 * 1024   # 64 MiB/TC physical: leave headroom
    if "v6" in kind:
        return 96 * 1024 * 1024   # 128 MiB physical
    return 64 * 1024 * 1024       # v5e & default (128 MiB physical)


def classifier_forward(vit_tokens, w1, b1, w2, b2, w3, b3, *, block_b=512,
                       out_dtype=jnp.float32):
    """vit_tokens: (B, S, D_in); weights (in, out); biases (1, out).

    Returns (B, output_dim) log-probs (same math as the PyTorch module in
    eval mode, with bf16-at-MXU compute if weights are bf16).
    """
    B, S, D_in = vit_tokens.shape
    d1 = w1.shape[1]
    d2 = w2.shape[1]
    d_out = w3.shape[1]

    # CLS selection + stream-dtype cast outside the kernel: contiguous,
    # sublane-dense (B, D_in) input in the weight (MXU) dtype -> half the
    # streamed HBM traffic when weights are bf16, no in-kernel relayout.
    x_cls = vit_tokens[:, 0, :].astype(w1.dtype)

    # Lane-dense output: pad the class dim up to a multiple of 128.
    d_out_pad = max(128, ((d_out + 127) // 128) * 128)
    if d_out_pad != d_out:
        w3 = jnp.pad(w3, ((0, 0), (0, d_out_pad - d_out)))
        b3 = jnp.pad(b3.astype(jnp.float32), ((0, 0), (0, d_out_pad - d_out)),
                     constant_values=_NEG_PAD)

    # Biases stay f32 (elementwise adds / softmax run in f32).
    b1 = b1.astype(jnp.float32)
    b2 = b2.astype(jnp.float32)
    b3 = b3.astype(jnp.float32)

    tb = _pick_batch_tile(B, block_b)
    grid = (pl.cdiv(B, tb),)

    flops = 2 * B * (D_in * d1 + d1 * d2 + d2 * d_out_pad)
    bytes_accessed = (B * D_in * x_cls.dtype.itemsize
                      + w1.size * w1.dtype.itemsize
                      + w2.size * w2.dtype.itemsize
                      + w3.size * w3.dtype.itemsize
                      + (d1 + d2 + d_out_pad) * 4
                      + B * d_out_pad * jnp.dtype(out_dtype).itemsize)

    def run(single_buffer_weights):
        # Constant-index residents don't need double buffering; Buffered(1)
        # reclaims the second buffer (frees VMEM for larger batch tiles).
        res_kw = ({"pipeline_mode": pl.Buffered(1)}
                  if single_buffer_weights else {})
        in_specs = [
            pl.BlockSpec((tb, D_in), lambda i: (i, 0)),            # CLS tile
            pl.BlockSpec((D_in, d1), lambda i: (0, 0), **res_kw),  # dense1 W
            pl.BlockSpec((1, d1), lambda i: (0, 0), **res_kw),     # dense1 b
            pl.BlockSpec((d1, d2), lambda i: (0, 0), **res_kw),    # dense2 W
            pl.BlockSpec((1, d2), lambda i: (0, 0), **res_kw),     # dense2 b
            pl.BlockSpec((d2, d_out_pad), lambda i: (0, 0), **res_kw),  # dense3 W
            pl.BlockSpec((1, d_out_pad), lambda i: (0, 0), **res_kw),   # dense3 b
        ]
        return pl.pallas_call(
            classifier_head_kernel,
            out_shape=jax.ShapeDtypeStruct((B, d_out_pad), out_dtype),
            grid=grid,
            in_specs=in_specs,
            out_specs=pl.BlockSpec((tb, d_out_pad), lambda i: (i, 0)),
            compiler_params=pltpu.CompilerParams(
                dimension_semantics=("parallel",),
                vmem_limit_bytes=_vmem_limit_bytes()),
            cost_estimate=pl.CostEstimate(
                flops=int(flops),
                transcendentals=int(B * d_out_pad + B),
                bytes_accessed=int(bytes_accessed)),
        )(x_cls, w1, b1, w2, b2, w3, b3)

    try:
        out_padded = run(True)
    except Exception:
        # pipeline_mode=pl.Buffered(1) not supported by this JAX/Mosaic:
        # fall back to default (double-buffered) residents.
        out_padded = run(False)

    # Drop the lane padding outside the kernel.
    return out_padded[:, :d_out]


if __name__ == "__main__":
    # Small shapes consistent with the module's forward (token 0 = CLS).
    B, S = 16, 8
    input_dim = 32            # ViT hidden dim
    dense_1_dim = 64
    dense_2_dim = 32
    output_dim = 16

    key = jax.random.PRNGKey(0)
    k_x, k_w1, k_b1, k_w2, k_b2, k_w3, k_b3 = jax.random.split(key, 7)

    # Stand-in for vision_transformer(x, [], [], []) token output (f32).
    vit_tokens = jax.random.normal(k_x, (B, S, input_dim), dtype=jnp.float32)

    # Parameters stored as (in, out); weights in bf16 (HBM/MXU-friendly),
    # biases in f32.
    w1 = (jax.random.normal(k_w1, (input_dim, dense_1_dim), jnp.float32) * 0.05
          ).astype(jnp.bfloat16)
    b1 = jax.random.normal(k_b1, (1, dense_1_dim), jnp.float32) * 0.05
    w2 = (jax.random.normal(k_w2, (dense_1_dim, dense_2_dim), jnp.float32) * 0.05
          ).astype(jnp.bfloat16)
    b2 = jax.random.normal(k_b2, (1, dense_2_dim), jnp.float32) * 0.05
    w3 = (jax.random.normal(k_w3, (dense_2_dim, output_dim), jnp.float32) * 0.05
          ).astype(jnp.bfloat16)
    b3 = jax.random.normal(k_b3, (1, output_dim), jnp.float32) * 0.05

    out = classifier_forward(vit_tokens, w1, b1, w2, b2, w3, b3)
    out = jax.block_until_ready(out)
    assert out.shape == (B, output_dim)

    # Reference with identical bf16-at-MXU / f32-accumulation math.
    x_cls = vit_tokens[:, 0, :].astype(jnp.bfloat16)
    h1 = jnp.maximum(jnp.dot(x_cls, w1,
                             preferred_element_type=jnp.float32) + b1, 0.0)
    h2 = jnp.maximum(jnp.dot(h1.astype(jnp.bfloat16), w2,
                             preferred_element_type=jnp.float32) + b2, 0.0)
    logits = jnp.dot(h2.astype(jnp.bfloat16), w3,
                     preferred_element_type=jnp.float32) + b3
    ref = jax.nn.log_softmax(logits, axis=1)
    assert jnp.allclose(out, ref, atol=2e-4, rtol=2e-4), \
        float(jnp.max(jnp.abs(out - ref)))

    # Full-f32 module reference (eval-mode dropout == identity); looser
    # tolerance covers bf16 quantization of input + weights only.
    x32 = vit_tokens[:, 0, :]
    h1f = jnp.maximum(x32 @ w1.astype(jnp.float32) + b1, 0.0)
    h2f = jnp.maximum(h1f @ w2.astype(jnp.float32) + b2, 0.0)
    ref_f32 = jax.nn.log_softmax(h2f @ w3.astype(jnp.float32) + b3, axis=1)
    assert jnp.allclose(out, ref_f32, atol=5e-2, rtol=5e-2)

    # log-probs must exponentiate-sum to ~1 per row.
    assert jnp.allclose(jnp.sum(jnp.exp(out), axis=1), 1.0, atol=1e-4)

    print("KERNEL_OK")
</pallas_src>

<mosaic_0001>
module attributes {stable_mosaic.version = 11 : i64} {
  func.func @classifier_head_kernel(%arg0: i32, %arg1: memref<8x32xbf16, #tpu.memory_space<vmem>>, %arg2: memref<32x64xbf16, #tpu.memory_space<vmem>>, %arg3: memref<1x64xf32, #tpu.memory_space<vmem>>, %arg4: memref<64x32xbf16, #tpu.memory_space<vmem>>, %arg5: memref<1x32xf32, #tpu.memory_space<vmem>>, %arg6: memref<32x128xbf16, #tpu.memory_space<vmem>>, %arg7: memref<1x128xf32, #tpu.memory_space<vmem>>, %arg8: memref<8x128xf32, #tpu.memory_space<vmem>>) attributes {dimension_semantics = [#tpu.dimension_semantics<parallel>], iteration_bounds = array<i64: 2>, scalar_prefetch = 0 : i64, scratch_operands = 0 : i64, tpu.core_type = #tpu.core_type<tc>, window_params = [{transform_indices = @transform_0, window_bounds = array<i64: 8, 32>}, {pipeline_mode = #tpu.pipeline_mode<synchronous>, transform_indices = @transform_1, window_bounds = array<i64: 32, 64>}, {pipeline_mode = #tpu.pipeline_mode<synchronous>, transform_indices = @transform_2, window_bounds = array<i64: 1, 64>}, {pipeline_mode = #tpu.pipeline_mode<synchronous>, transform_indices = @transform_3, window_bounds = array<i64: 64, 32>}, {pipeline_mode = #tpu.pipeline_mode<synchronous>, transform_indices = @transform_4, window_bounds = array<i64: 1, 32>}, {pipeline_mode = #tpu.pipeline_mode<synchronous>, transform_indices = @transform_5, window_bounds = array<i64: 32, 128>}, {pipeline_mode = #tpu.pipeline_mode<synchronous>, transform_indices = @transform_6, window_bounds = array<i64: 1, 128>}, {transform_indices = @transform_7, window_bounds = array<i64: 8, 128>}]} {
    %c0 = arith.constant 0 : index
    %c0_0 = arith.constant 0 : index
    %0 = vector.load %arg1[%c0, %c0_0] : memref<8x32xbf16, #tpu.memory_space<vmem>>, vector<8x32xbf16>
    %c0_1 = arith.constant 0 : index
    %c0_2 = arith.constant 0 : index
    %1 = vector.load %arg2[%c0_1, %c0_2] : memref<32x64xbf16, #tpu.memory_space<vmem>>, vector<32x64xbf16>
    %cst = arith.constant dense<0.000000e+00> : vector<8x64xf32>
    %2 = tpu.matmul %0, %1, %cst {dimension_numbers = #tpu.dot_dimension_numbers<[1], [0], [0], [1], [0, 0, 1, 1], [], []>} : vector<8x32xbf16>, vector<32x64xbf16>, vector<8x64xf32> -> vector<8x64xf32>
    %c0_3 = arith.constant 0 : index
    %c0_4 = arith.constant 0 : index
    %3 = vector.load %arg3[%c0_3, %c0_4] : memref<1x64xf32, #tpu.memory_space<vmem>>, vector<1x64xf32>
    %4 = vector.broadcast %3 : vector<1x64xf32> to vector<8x64xf32>
    %5 = arith.addf %2, %4 : vector<8x64xf32>
    %cst_5 = arith.constant 0.000000e+00 : f32
    %6 = vector.broadcast %cst_5 : f32 to vector<8x64xf32>
    %7 = arith.maximumf %5, %6 : vector<8x64xf32>
    %8 = arith.truncf %7 : vector<8x64xf32> to vector<8x64xbf16>
    %c0_6 = arith.constant 0 : index
    %c0_7 = arith.constant 0 : index
    %9 = vector.load %arg4[%c0_6, %c0_7] : memref<64x32xbf16, #tpu.memory_space<vmem>>, vector<64x32xbf16>
    %cst_8 = arith.constant dense<0.000000e+00> : vector<8x32xf32>
    %10 = tpu.matmul %8, %9, %cst_8 {dimension_numbers = #tpu.dot_dimension_numbers<[1], [0], [0], [1], [0, 0, 1, 1], [], []>} : vector<8x64xbf16>, vector<64x32xbf16>, vector<8x32xf32> -> vector<8x32xf32>
    %c0_9 = arith.constant 0 : index
    %c0_10 = arith.constant 0 : index
    %11 = vector.load %arg5[%c0_9, %c0_10] : memref<1x32xf32, #tpu.memory_space<vmem>>, vector<1x32xf32>
    %12 = vector.broadcast %11 : vector<1x32xf32> to vector<8x32xf32>
    %13 = arith.addf %10, %12 : vector<8x32xf32>
    %cst_11 = arith.constant 0.000000e+00 : f32
    %14 = vector.broadcast %cst_11 : f32 to vector<8x32xf32>
    %15 = arith.maximumf %13, %14 : vector<8x32xf32>
    %16 = arith.truncf %15 : vector<8x32xf32> to vector<8x32xbf16>
    %c0_12 = arith.constant 0 : index
    %c0_13 = arith.constant 0 : index
    %17 = vector.load %arg6[%c0_12, %c0_13] : memref<32x128xbf16, #tpu.memory_space<vmem>>, vector<32x128xbf16>
    %cst_14 = arith.constant dense<0.000000e+00> : vector<8x128xf32>
    %18 = tpu.matmul %16, %17, %cst_14 {dimension_numbers = #tpu.dot_dimension_numbers<[1], [0], [0], [1], [0, 0, 1, 1], [], []>} : vector<8x32xbf16>, vector<32x128xbf16>, vector<8x128xf32> -> vector<8x128xf32>
    %c0_15 = arith.constant 0 : index
    %c0_16 = arith.constant 0 : index
    %19 = vector.load %arg7[%c0_15, %c0_16] : memref<1x128xf32, #tpu.memory_space<vmem>>, vector<1x128xf32>
    %20 = vector.broadcast %19 : vector<1x128xf32> to vector<8x128xf32>
    %21 = arith.addf %18, %20 : vector<8x128xf32>
    %cst_17 = arith.constant dense<0xFF800000> : vector<8xf32>
    %22 = vector.multi_reduction <maximumf>, %21, %cst_17 [1] : vector<8x128xf32> to vector<8xf32>
    %23 = vector.shape_cast %22 : vector<8xf32> to vector<8x1xf32>
    %24 = vector.broadcast %23 : vector<8x1xf32> to vector<8x128xf32>
    %25 = arith.subf %21, %24 : vector<8x128xf32>
    %26 = math.exp %25 : vector<8x128xf32>
    %cst_18 = arith.constant dense<0.000000e+00> : vector<8xf32>
    %27 = vector.multi_reduction <add>, %26, %cst_18 [1] : vector<8x128xf32> to vector<8xf32>
    %28 = vector.shape_cast %27 : vector<8xf32> to vector<8x1xf32>
    %29 = math.log %28 : vector<8x1xf32>
    %30 = vector.broadcast %29 : vector<8x1xf32> to vector<8x128xf32>
    %31 = arith.subf %25, %30 : vector<8x128xf32>
    %c0_19 = arith.constant 0 : index
    %c0_20 = arith.constant 0 : index
    %32 = vector.load %arg8[%c0_19, %c0_20] : memref<8x128xf32, #tpu.memory_space<vmem>>, vector<8x128xf32>
    tpu.vector_store %arg8[%c0_19, %c0_20], %31 {strides = array<i32>} : memref<8x128xf32, #tpu.memory_space<vmem>>, vector<8x128xf32>,
    return
  }
  func.func @transform_0(%arg0: i32) -> (i32, i32) {
    %c0_i32 = arith.constant 0 : i32
    %c0_i32_0 = arith.constant 0 : i32
    return %arg0, %c0_i32 : i32, i32
  }
  func.func @transform_1(%arg0: i32) -> (i32, i32) {
    %c0_i32 = arith.constant 0 : i32
    %c0_i32_0 = arith.constant 0 : i32
    %c0_i32_1 = arith.constant 0 : i32
    return %c0_i32, %c0_i32_0 : i32, i32
  }
  func.func @transform_2(%arg0: i32) -> (i32, i32) {
    %c0_i32 = arith.constant 0 : i32
    %c0_i32_0 = arith.constant 0 : i32
    %c0_i32_1 = arith.constant 0 : i32
    return %c0_i32, %c0_i32_0 : i32, i32
  }
  func.func @transform_3(%arg0: i32) -> (i32, i32) {
    %c0_i32 = arith.constant 0 : i32
    %c0_i32_0 = arith.constant 0 : i32
    %c0_i32_1 = arith.constant 0 : i32
    return %c0_i32, %c0_i32_0 : i32, i32
  }
  func.func @transform_4(%arg0: i32) -> (i32, i32) {
    %c0_i32 = arith.constant 0 : i32
    %c0_i32_0 = arith.constant 0 : i32
    %c0_i32_1 = arith.constant 0 : i32
    return %c0_i32, %c0_i32_0 : i32, i32
  }
  func.func @transform_5(%arg0: i32) -> (i32, i32) {
    %c0_i32 = arith.constant 0 : i32
    %c0_i32_0 = arith.constant 0 : i32
    %c0_i32_1 = arith.constant 0 : i32
    return %c0_i32, %c0_i32_0 : i32, i32
  }
  func.func @transform_6(%arg0: i32) -> (i32, i32) {
    %c0_i32 = arith.constant 0 : i32
    %c0_i32_0 = arith.constant 0 : i32
    %c0_i32_1 = arith.constant 0 : i32
    return %c0_i32, %c0_i32_0 : i32, i32
  }
  func.func @transform_7(%arg0: i32) -> (i32, i32) {
    %c0_i32 = arith.constant 0 : i32
    %c0_i32_0 = arith.constant 0 : i32
    return %arg0, %c0_i32 : i32, i32
  }
}

module attributes {stable_mosaic.version = 11 : i64} {
  func.func @classifier_head_kernel(%arg0: i32, %arg1: memref<8x32xbf16, #tpu.memory_space<vmem>>, %arg2: memref<32x64xbf16, #tpu.memory_space<vmem>>, %arg3: memref<1x64xf32, #tpu.memory_space<vmem>>, %arg4: memref<64x32xbf16, #tpu.memory_space<vmem>>, %arg5: memref<1x32xf32, #tpu.memory_space<vmem>>, %arg6: memref<32x128xbf16, #tpu.memory_space<vmem>>, %arg7: memref<1x128xf32, #tpu.memory_space<vmem>>, %arg8: memref<8x128xf32, #tpu.memory_space<vmem>>) attributes {dimension_semantics = [#tpu.dimension_semantics<parallel>], iteration_bounds = array<i64: 2>, scalar_prefetch = 0 : i64, scratch_operands = 0 : i64, tpu.core_type = #tpu.core_type<tc>, window_params = [{transform_indices = @transform_0, window_bounds = array<i64: 8, 32>}, {pipeline_mode = #tpu.pipeline_mode<synchronous>, transform_indices = @transform_1, window_bounds = array<i64: 32, 64>}, {pipeline_mode = #tpu.pipeline_mode<synchronous>, transform_indices = @transform_2, window_bounds = array<i64: 1, 64>}, {pipeline_mode = #tpu.pipeline_mode<synchronous>, transform_indices = @transform_3, window_bounds = array<i64: 64, 32>}, {pipeline_mode = #tpu.pipeline_mode<synchronous>, transform_indices = @transform_4, window_bounds = array<i64: 1, 32>}, {pipeline_mode = #tpu.pipeline_mode<synchronous>, transform_indices = @transform_5, window_bounds = array<i64: 32, 128>}, {pipeline_mode = #tpu.pipeline_mode<synchronous>, transform_indices = @transform_6, window_bounds = array<i64: 1, 128>}, {transform_indices = @transform_7, window_bounds = array<i64: 8, 128>}]} {
    %c0 = arith.constant 0 : index
    %c0_0 = arith.constant 0 : index
    %0 = vector.load %arg1[%c0, %c0_0] : memref<8x32xbf16, #tpu.memory_space<vmem>>, vector<8x32xbf16>
    %c0_1 = arith.constant 0 : index
    %c0_2 = arith.constant 0 : index
    %1 = vector.load %arg2[%c0_1, %c0_2] : memref<32x64xbf16, #tpu.memory_space<vmem>>, vector<32x64xbf16>
    %cst = arith.constant dense<0.000000e+00> : vector<8x64xf32>
    %2 = tpu.matmul %0, %1, %cst {dimension_numbers = #tpu.dot_dimension_numbers<[1], [0], [0], [1], [0, 0, 1, 1], [], []>} : vector<8x32xbf16>, vector<32x64xbf16>, vector<8x64xf32> -> vector<8x64xf32>
    %c0_3 = arith.constant 0 : index
    %c0_4 = arith.constant 0 : index
    %3 = vector.load %arg3[%c0_3, %c0_4] : memref<1x64xf32, #tpu.memory_space<vmem>>, vector<1x64xf32>
    %4 = vector.broadcast %3 : vector<1x64xf32> to vector<8x64xf32>
    %5 = arith.addf %2, %4 : vector<8x64xf32>
    %cst_5 = arith.constant 0.000000e+00 : f32
    %6 = vector.broadcast %cst_5 : f32 to vector<8x64xf32>
    %7 = arith.maximumf %5, %6 : vector<8x64xf32>
    %8 = arith.truncf %7 : vector<8x64xf32> to vector<8x64xbf16>
    %c0_6 = arith.constant 0 : index
    %c0_7 = arith.constant 0 : index
    %9 = vector.load %arg4[%c0_6, %c0_7] : memref<64x32xbf16, #tpu.memory_space<vmem>>, vector<64x32xbf16>
    %cst_8 = arith.constant dense<0.000000e+00> : vector<8x32xf32>
    %10 = tpu.matmul %8, %9, %cst_8 {dimension_numbers = #tpu.dot_dimension_numbers<[1], [0], [0], [1], [0, 0, 1, 1], [], []>} : vector<8x64xbf16>, vector<64x32xbf16>, vector<8x32xf32> -> vector<8x32xf32>
    %c0_9 = arith.constant 0 : index
    %c0_10 = arith.constant 0 : index
    %11 = vector.load %arg5[%c0_9, %c0_10] : memref<1x32xf32, #tpu.memory_space<vmem>>, vector<1x32xf32>
    %12 = vector.broadcast %11 : vector<1x32xf32> to vector<8x32xf32>
    %13 = arith.addf %10, %12 : vector<8x32xf32>
    %cst_11 = arith.constant 0.000000e+00 : f32
    %14 = vector.broadcast %cst_11 : f32 to vector<8x32xf32>
    %15 = arith.maximumf %13, %14 : vector<8x32xf32>
    %16 = arith.truncf %15 : vector<8x32xf32> to vector<8x32xbf16>
    %c0_12 = arith.constant 0 : index
    %c0_13 = arith.constant 0 : index
    %17 = vector.load %arg6[%c0_12, %c0_13] : memref<32x128xbf16, #tpu.memory_space<vmem>>, vector<32x128xbf16>
    %cst_14 = arith.constant dense<0.000000e+00> : vector<8x128xf32>
    %18 = tpu.matmul %16, %17, %cst_14 {dimension_numbers = #tpu.dot_dimension_numbers<[1], [0], [0], [1], [0, 0, 1, 1], [], []>} : vector<8x32xbf16>, vector<32x128xbf16>, vector<8x128xf32> -> vector<8x128xf32>
    %c0_15 = arith.constant 0 : index
    %c0_16 = arith.constant 0 : index
    %19 = vector.load %arg7[%c0_15, %c0_16] : memref<1x128xf32, #tpu.memory_space<vmem>>, vector<1x128xf32>
    %20 = vector.broadcast %19 : vector<1x128xf32> to vector<8x128xf32>
    %21 = arith.addf %18, %20 : vector<8x128xf32>
    %cst_17 = arith.constant dense<0xFF800000> : vector<8xf32>
    %22 = vector.multi_reduction <maximumf>, %21, %cst_17 [1] : vector<8x128xf32> to vector<8xf32>
    %23 = vector.shape_cast %22 : vector<8xf32> to vector<8x1xf32>
    %24 = vector.broadcast %23 : vector<8x1xf32> to vector<8x128xf32>
    %25 = arith.subf %21, %24 : vector<8x128xf32>
    %26 = math.exp %25 : vector<8x128xf32>
    %cst_18 = arith.constant dense<0.000000e+00> : vector<8xf32>
    %27 = vector.multi_reduction <add>, %26, %cst_18 [1] : vector<8x128xf32> to vector<8xf32>
    %28 = vector.shape_cast %27 : vector<8xf32> to vector<8x1xf32>
    %29 = math.log %28 : vector<8x1xf32>
    %30 = vector.broadcast %29 : vector<8x1xf32> to vector<8x128xf32>
    %31 = arith.subf %25, %30 : vector<8x128xf32>
    %c0_19 = arith.constant 0 : index
    %c0_20 = arith.constant 0 : index
    %32 = vector.load %arg8[%c0_19, %c0_20] : memref<8x128xf32, #tpu.memory_space<vmem>>, vector<8x128xf32>
    tpu.vector_store %arg8[%c0_19, %c0_20], %31 {strides = array<i32>} : memref<8x128xf32, #tpu.memory_space<vmem>>, vector<8x128xf32>,
    return
  }
  func.func @transform_0(%arg0: i32) -> (i32, i32) {
    %c0_i32 = arith.constant 0 : i32
    %c0_i32_0 = arith.constant 0 : i32
    return %arg0, %c0_i32 : i32, i32
  }
  func.func @transform_1(%arg0: i32) -> (i32, i32) {
    %c0_i32 = arith.constant 0 : i32
    %c0_i32_0 = arith.constant 0 : i32
    %c0_i32_1 = arith.constant 0 : i32
    return %c0_i32, %c0_i32_0 : i32, i32
  }
  func.func @transform_2(%arg0: i32) -> (i32, i32) {
    %c0_i32 = arith.constant 0 : i32
    %c0_i32_0 = arith.constant 0 : i32
    %c0_i32_1 = arith.constant 0 : i32
    return %c0_i32, %c0_i32_0 : i32, i32
  }
  func.func @transform_3(%arg0: i32) -> (i32, i32) {
    %c0_i32 = arith.constant 0 : i32
    %c0_i32_0 = arith.constant 0 : i32
    %c0_i32_1 = arith.constant 0 : i32
    return %c0_i32, %c0_i32_0 : i32, i32
  }
  func.func @transform_4(%arg0: i32) -> (i32, i32) {
    %c0_i32 = arith.constant 0 : i32
    %c0_i32_0 = arith.constant 0 : i32
    %c0_i32_1 = arith.constant 0 : i32
    return %c0_i32, %c0_i32_0 : i32, i32
  }
  func.func @transform_5(%arg0: i32) -> (i32, i32) {
    %c0_i32 = arith.constant 0 : i32
    %c0_i32_0 = arith.constant 0 : i32
    %c0_i32_1 = arith.constant 0 : i32
    return %c0_i32, %c0_i32_0 : i32, i32
  }
  func.func @transform_6(%arg0: i32) -> (i32, i32) {
    %c0_i32 = arith.constant 0 : i32
    %c0_i32_0 = arith.constant 0 : i32
    %c0_i32_1 = arith.constant 0 : i32
    return %c0_i32, %c0_i32_0 : i32, i32
  }
  func.func @transform_7(%arg0: i32) -> (i32, i32) {
    %c0_i32 = arith.constant 0 : i32
    %c0_i32_0 = arith.constant 0 : i32
    return %arg0, %c0_i32 : i32, i32
  }
}

</mosaic_0001>

<llo_original>
// kernel: tpu_custom_call.1
$region0: #{tpu_custom_call.1}
  #allocation0 [shape = 'u32[]', space=smem, size = 0x4, offset = 0x4, fixed_abs, tag = 'smem constant byte address 0x4 - core index']
  #allocation1 [shape = 'u32[144,128]{1,0:T(1,128)}', space=vmem, size = 0x12000, scoped, tag = 'internal scratch']
  %s0 = inlined_call_operand.vmem [shape: bf16[16,32], index: 0, kind: input, shape index: {}]
  %s1 = inlined_call_operand.vmem [shape: bf16[32,64], index: 1, kind: input, shape index: {}]
  %s2 = inlined_call_operand.vmem [shape: f32[1,64], index: 2, kind: input, shape index: {}]
  %s3 = inlined_call_operand.vmem [shape: bf16[64,32], index: 3, kind: input, shape index: {}]
  %s4 = inlined_call_operand.vmem [shape: f32[1,32], index: 4, kind: input, shape index: {}]
  %s5 = inlined_call_operand.vmem [shape: bf16[32,128], index: 5, kind: input, shape index: {}]
  %s6 = inlined_call_operand.vmem [shape: f32[1,128], index: 6, kind: input, shape index: {}]
  %s7 = inlined_call_operand.hbm [shape: f32[16,128], index: 7, kind: output, shape index: {}]
  %s8 = sld [smem:[#allocation0]]
  $region61: #{tpu_custom_call.1} parent=0
    _
  %s10 = ssub.s32 1, %s8
  %s11 = scalar_select 0, %s10, %s8
  $region1: #{tpu_custom_call.1} parent=0
    #allocation2 [shape = 'u8[8192]{0}', space=vmem, size = 0x2000, scoped, tag = 'output window, operand 0']
    #allocation3 [shape = 's32[2]{0}', space=sflag, size = 0x8, scoped, tag = 'scoped memory for tpu_custom_call.1']
    %12 = vsyncpa [#allocation3], 0
    %s13 = scalar_lea.sflag [#allocation3], 1
    %14 = vsyncpa %s13, 0
    loop: start=0, step=1, limit=4
    $region2: #{tpu_custom_call.1} parent=1 // loop_pre_header
      _
    $region3: #{tpu_custom_call.1} parent=1 // loop_header
      %s16 = sphi 0, %s20
      %p17 = scmp.ge.s32.totalorder %s16, 4
      %s26 = sphi 0, %s28
      %s29 = sphi 0, %s26
      %s30 = sphi 0, %s29
      %s46 = sphi 0, %s30
      %s50 = sphi 0, %s50
      %s52 = sphi 0, %s50
      %s53 = sphi 0, %s52
      %s67 = sphi 0, %s53
      %s71 = sphi 0, %s71
      %s73 = sphi 0, %s71
      %s74 = sphi 0, %s73
      %s88 = sphi 0, %s74
      %s92 = sphi 0, %s92
      %s94 = sphi 0, %s92
      %s95 = sphi 0, %s94
      %s109 = sphi 0, %s95
      %s113 = sphi 0, %s113
      %s115 = sphi 0, %s113
      %s116 = sphi 0, %s115
      %s130 = sphi 0, %s116
      %s134 = sphi 0, %s134
      %s136 = sphi 0, %s134
      %s137 = sphi 0, %s136
      %s151 = sphi 0, %s137
      %s155 = sphi 0, %s155
      %s157 = sphi 0, %s155
      %s158 = sphi 0, %s157
      %s172 = sphi 0, %s158
      %s178 = sphi 0, %s180
      %s181 = sphi 0, %s178
      %s182 = sphi 0, %s181
      %s198 = sphi 0, %s182
    $region4: #{tpu_custom_call.1} parent=1 // loop_header_branch
      %19 = sbr.rel (%p17) target = $region8
    $region5: #{tpu_custom_call.1} parent=1 // loop_body
      %s21 = ssub.s32 %s16, 1
      %s22 = ssub.s32 %s16, 2
      %s23 = sadd.s32 %s16, 1
      %s24 = ssub.s32 %s16, %s23
      %p25 = scmp.eq.s32.totalorder %s24, 0
      %s27 = sadd.s32 %s26, 1
      %s28 = scalar_select %p25, %s26, %s27
      %p31 = pneg %p25
      %p32 = scmp.eq.s32.totalorder %s16, 1
      %p33 = por %p31, %p32
      %p34 = scmp.ne.s32.totalorder %s26, %s29
      %p35 = scmp.eq.s32.totalorder %s16, 0
      %p36 = por %p34, %p35
      %p37 = scmp.ne.s32.totalorder %s26, %s29
      %p38 = scmp.eq.s32.totalorder %s21, 1
      %p39 = por %p37, %p38
      %p40 = scmp.ne.s32.totalorder %s29, %s30
      %p41 = scmp.eq.s32.totalorder %s21, 0
      %p42 = por %p40, %p41
      %p43 = scmp.ne.s32.totalorder %s29, %s30
      %p44 = scmp.eq.s32.totalorder %s22, 1
      %p45 = por %p43, %p44
      %p47 = scmp.ne.s32.totalorder %s30, %s46
      %p48 = scmp.eq.s32.totalorder %s22, 0
      %p49 = por %p47, %p48
      %s51 = sadd.s32 %s50, 1
      %p54 = scmp.eq.s32.totalorder %s16, 1
      %p55 = scmp.ne.s32.totalorder %s50, %s52
      %p56 = scmp.eq.s32.totalorder %s16, 0
      %p57 = por %p55, %p56
      %p58 = scmp.ne.s32.totalorder %s50, %s52
      %p59 = scmp.eq.s32.totalorder %s21, 1
      %p60 = por %p58, %p59
      %p61 = scmp.ne.s32.totalorder %s52, %s53
      %p62 = scmp.eq.s32.totalorder %s21, 0
      %p63 = por %p61, %p62
      %p64 = scmp.ne.s32.totalorder %s52, %s53
      %p65 = scmp.eq.s32.totalorder %s22, 1
      %p66 = por %p64, %p65
      %p68 = scmp.ne.s32.totalorder %s53, %s67
      %p69 = scmp.eq.s32.totalorder %s22, 0
      %p70 = por %p68, %p69
      %s72 = sadd.s32 %s71, 1
      %p75 = scmp.eq.s32.totalorder %s16, 1
      %p76 = scmp.ne.s32.totalorder %s71, %s73
      %p77 = scmp.eq.s32.totalorder %s16, 0
      %p78 = por %p76, %p77
      %p79 = scmp.ne.s32.totalorder %s71, %s73
      %p80 = scmp.eq.s32.totalorder %s21, 1
      %p81 = por %p79, %p80
      %p82 = scmp.ne.s32.totalorder %s73, %s74
      %p83 = scmp.eq.s32.totalorder %s21, 0
      %p84 = por %p82, %p83
      %p85 = scmp.ne.s32.totalorder %s73, %s74
      %p86 = scmp.eq.s32.totalorder %s22, 1
      %p87 = por %p85, %p86
      %p89 = scmp.ne.s32.totalorder %s74, %s88
      %p90 = scmp.eq.s32.totalorder %s22, 0
      %p91 = por %p89, %p90
      %s93 = sadd.s32 %s92, 1
      %p96 = scmp.eq.s32.totalorder %s16, 1
      %p97 = scmp.ne.s32.totalorder %s92, %s94
      %p98 = scmp.eq.s32.totalorder %s16, 0
      %p99 = por %p97, %p98
      %p100 = scmp.ne.s32.totalorder %s92, %s94
      %p101 = scmp.eq.s32.totalorder %s21, 1
      %p102 = por %p100, %p101
      %p103 = scmp.ne.s32.totalorder %s94, %s95
      %p104 = scmp.eq.s32.totalorder %s21, 0
      %p105 = por %p103, %p104
      %p106 = scmp.ne.s32.totalorder %s94, %s95
      %p107 = scmp.eq.s32.totalorder %s22, 1
      %p108 = por %p106, %p107
      %p110 = scmp.ne.s32.totalorder %s95, %s109
      %p111 = scmp.eq.s32.totalorder %s22, 0
      %p112 = por %p110, %p111
      %s114 = sadd.s32 %s113, 1
      %p117 = scmp.eq.s32.totalorder %s16, 1
      %p118 = scmp.ne.s32.totalorder %s113, %s115
      %p119 = scmp.eq.s32.totalorder %s16, 0
      %p120 = por %p118, %p119
      %p121 = scmp.ne.s32.totalorder %s113, %s115
      %p122 = scmp.eq.s32.totalorder %s21, 1
      %p123 = por %p121, %p122
      %p124 = scmp.ne.s32.totalorder %s115, %s116
      %p125 = scmp.eq.s32.totalorder %s21, 0
      %p126 = por %p124, %p125
      %p127 = scmp.ne.s32.totalorder %s115, %s116
      %p128 = scmp.eq.s32.totalorder %s22, 1
      %p129 = por %p127, %p128
      %p131 = scmp.ne.s32.totalorder %s116, %s130
      %p132 = scmp.eq.s32.totalorder %s22, 0
      %p133 = por %p131, %p132
      %s135 = sadd.s32 %s134, 1
      %p138 = scmp.eq.s32.totalorder %s16, 1
      %p139 = scmp.ne.s32.totalorder %s134, %s136
      %p140 = scmp.eq.s32.totalorder %s16, 0
      %p141 = por %p139, %p140
      %p142 = scmp.ne.s32.totalorder %s134, %s136
      %p143 = scmp.eq.s32.totalorder %s21, 1
      %p144 = por %p142, %p143
      %p145 = scmp.ne.s32.totalorder %s136, %s137
      %p146 = scmp.eq.s32.totalorder %s21, 0
      %p147 = por %p145, %p146
      %p148 = scmp.ne.s32.totalorder %s136, %s137
      %p149 = scmp.eq.s32.totalorder %s22, 1
      %p150 = por %p148, %p149
      %p152 = scmp.ne.s32.totalorder %s137, %s151
      %p153 = scmp.eq.s32.totalorder %s22, 0
      %p154 = por %p152, %p153
      %s156 = sadd.s32 %s155, 1
      %p159 = scmp.eq.s32.totalorder %s16, 1
      %p160 = scmp.ne.s32.totalorder %s155, %s157
      %p161 = scmp.eq.s32.totalorder %s16, 0
      %p162 = por %p160, %p161
      %p163 = scmp.ne.s32.totalorder %s155, %s157
      %p164 = scmp.eq.s32.totalorder %s21, 1
      %p165 = por %p163, %p164
      %p166 = scmp.ne.s32.totalorder %s157, %s158
      %p167 = scmp.eq.s32.totalorder %s21, 0
      %p168 = por %p166, %p167
      %p169 = scmp.ne.s32.totalorder %s157, %s158
      %p170 = scmp.eq.s32.totalorder %s22, 1
      %p171 = por %p169, %p170
      %p173 = scmp.ne.s32.totalorder %s158, %s172
      %p174 = scmp.eq.s32.totalorder %s22, 0
      %p175 = por %p173, %p174
      %s176 = ssub.s32 %s16, %s23
      %p177 = scmp.eq.s32.totalorder %s176, 0
      %s179 = sadd.s32 %s178, 1
      %s180 = scalar_select %p177, %s178, %s179
      %p183 = pneg %p177
      %p184 = scmp.eq.s32.totalorder %s16, 1
      %p185 = por %p183, %p184
      %p186 = scmp.ne.s32.totalorder %s178, %s181
      %p187 = scmp.eq.s32.totalorder %s16, 0
      %p188 = por %p186, %p187
      %p189 = scmp.ne.s32.totalorder %s178, %s181
      %p190 = scmp.eq.s32.totalorder %s21, 1
      %p191 = por %p189, %p190
      %p192 = scmp.ne.s32.totalorder %s181, %s182
      %p193 = scmp.eq.s32.totalorder %s21, 0
      %p194 = por %p192, %p193
      %p195 = scmp.ne.s32.totalorder %s181, %s182
      %p196 = scmp.eq.s32.totalorder %s22, 1
      %p197 = por %p195, %p196
      %p199 = scmp.ne.s32.totalorder %s182, %s198
      %p200 = scmp.eq.s32.totalorder %s22, 0
      %p201 = por %p199, %p200
      %p202 = scmp.le.s32.totalorder 1, %s16
      %p203 = scmp.lt.s32.totalorder %s16, 3
      %p204 = pnand %p202, %p203
      %p205 = pneg %p204
      // Predicated region
      $region9: #{tpu_custom_call.1} parent=5 // pred_check
        _
      $region10: #{tpu_custom_call.1} parent=5 // pred_check_branch
        %207 = sbr.rel (%p204) target = $region12
      $region11: #{tpu_custom_call.1} parent=5 // pred_region
        %s208 = ssub.s32 %s16, 1
        // Predicated region
        $region13: #{tpu_custom_call.1} parent=11 // pred_check
          %p209 = pneg %p63
        $region14: #{tpu_custom_call.1} parent=11 // pred_check_branch
          %211 = sbr.rel (%p209) target = $region16
        $region15: #{tpu_custom_call.1} parent=11 // pred_region
          _
        $region16: #{tpu_custom_call.1} parent=11 // pred_fallthru
          _
        // Predicated region
        $region17: #{tpu_custom_call.1} parent=11 // pred_check
          %p212 = pneg %p84
        $region18: #{tpu_custom_call.1} parent=11 // pred_check_branch
          %214 = sbr.rel (%p212) target = $region20
        $region19: #{tpu_custom_call.1} parent=11 // pred_region
          _
        $region20: #{tpu_custom_call.1} parent=11 // pred_fallthru
          _
        // Predicated region
        $region21: #{tpu_custom_call.1} parent=11 // pred_check
          %p215 = pneg %p105
        $region22: #{tpu_custom_call.1} parent=11 // pred_check_branch
          %217 = sbr.rel (%p215) target = $region24
        $region23: #{tpu_custom_call.1} parent=11 // pred_region
          _
        $region24: #{tpu_custom_call.1} parent=11 // pred_fallthru
          _
        // Predicated region
        $region25: #{tpu_custom_call.1} parent=11 // pred_check
          %p218 = pneg %p126
        $region26: #{tpu_custom_call.1} parent=11 // pred_check_branch
          %220 = sbr.rel (%p218) target = $region28
        $region27: #{tpu_custom_call.1} parent=11 // pred_region
          _
        $region28: #{tpu_custom_call.1} parent=11 // pred_fallthru
          _
        // Predicated region
        $region29: #{tpu_custom_call.1} parent=11 // pred_check
          %p221 = pneg %p147
        $region30: #{tpu_custom_call.1} parent=11 // pred_check_branch
          %223 = sbr.rel (%p221) target = $region32
        $region31: #{tpu_custom_call.1} parent=11 // pred_region
          _
        $region32: #{tpu_custom_call.1} parent=11 // pred_fallthru
          _
        // Predicated region
        $region33: #{tpu_custom_call.1} parent=11 // pred_check
          %p224 = pneg %p168
        $region34: #{tpu_custom_call.1} parent=11 // pred_check_branch
          %226 = sbr.rel (%p224) target = $region36
        $region35: #{tpu_custom_call.1} parent=11 // pred_region
          _
        $region36: #{tpu_custom_call.1} parent=11 // pred_fallthru
          _
      $region12: #{tpu_custom_call.1} parent=5 // pred_fallthru
        _
      %p227 = scmp.lt.s32.totalorder %s16, 2
      // Predicated region
      $region37: #{tpu_custom_call.1} parent=5 // pred_check
        %p228 = pneg %p227
      $region38: #{tpu_custom_call.1} parent=5 // pred_check_branch
        %230 = sbr.rel (%p228) target = $region40
      $region39: #{tpu_custom_call.1} parent=5 // pred_region
        // Predicated region
        $region41: #{tpu_custom_call.1} parent=39 // pred_check
          %p231 = pneg %p36
        $region42: #{tpu_custom_call.1} parent=39 // pred_check_branch
          %233 = sbr.rel (%p231) target = $region44
        $region43: #{tpu_custom_call.1} parent=39 // pred_region
          %p234 = scmp.lt.s32.totalorder %s16, 1
          %s235 = scalar_select %p234, %s16, 1
          %s236 = smul.addr %s235, 4
          %s237 = scalar_lea.vmem %s0, %s236
        $region44: #{tpu_custom_call.1} parent=39 // pred_fallthru
          _
      $region40: #{tpu_custom_call.1} parent=5 // pred_fallthru
        _
      %p238 = scmp.le.s32.totalorder 1, %s16
      %p239 = scmp.lt.s32.totalorder %s16, 3
      %p240 = pnand %p238, %p239
      %p241 = pneg %p240
      // Predicated region
      $region45: #{tpu_custom_call.1} parent=5 // pred_check
        _
      $region46: #{tpu_custom_call.1} parent=5 // pred_check_branch
        %243 = sbr.rel (%p240) target = $region48
      $region47: #{tpu_custom_call.1} parent=5 // pred_region
        %s244 = ssub.s32 %s16, 1
        %p245 = scmp.lt.s32.totalorder %s21, 1
        %s246 = scalar_select %p245, %s21, 1
        %s247 = smul.addr %s246, 4
        %s248 = scalar_lea.vmem %s0, %s247
        %p249 = pneg %p42
        %p250 = pneg %p39
        %p251 = pneg %p63
        %p252 = pneg %p60
        %p253 = pneg %p84
        %p254 = pneg %p81
        %p255 = pneg %p105
        %p256 = pneg %p102
        %p257 = pneg %p126
        %p258 = pneg %p123
        %p259 = pneg %p147
        %p260 = pneg %p144
        %p261 = pneg %p168
        %p262 = pneg %p165
        %p263 = pneg %p194
        %p264 = pneg %p191
        %s265 = sand.u32 %s181, 1
        %s266 = scalar_lea.sflag [#allocation3], %s265
        %s267 = sand.u32 %s181, 1
        %s268 = smul.addr %s267, 8
        %s269 = scalar_lea.vmem [#allocation2], %s268
        %p270 = scmp.lt.s32.totalorder %s21, 1
        %s271 = scalar_select %p270, %s21, 1
        %s272 = smul.addr %s271, 4
        %s273 = scalar_lea.vmem %s0, %s272
        %v275 = vld [vmem:[%s273] sm:$0xf]
        %v276 = vld [vmem:[%s1] sm:$0xf]
        %v277 = vld [vmem:[%s1 + $0x4] sm:$0xf]
        %v278 = vld [vmem:[%s1 + $0x8] sm:$0xf]
        %v279 = vld [vmem:[%s1 + $0xc] sm:$0xf]
        %v280 = vld [vmem:[%s2] sm:$0x1]
        %v282 = vlaneseq
        %v283 = vshrl.u32 %v282, 7
        %v284 = vsub.s32 0, %v283
        %v285 = vrot.slane %v280, %v284
        %v291 = vunpack.c.l.b16 %v276
        %v292 = vunpack.c.l.b16 %v277
        %v293 = vunpack.c.l.b16 %v278
        %v294 = vunpack.c.l.b16 %v279
        %v295 = vpack.c.b16 %v292, %v291
        %v296 = vpack.c.b16 %v294, %v293
        %vm299 = vcmask 261120
        %v301 = vsel %vm299, %v275, 0
        %303 = vmatprep.subr.bf16.mxu0 0
        %304 = vmatpush1.bf16.msra.mxu0 0
        %305 = vmatprep.subr.bf16.mxu0 0
        %306 = vmatpush1.bf16.msra.mxu0 0
        %307 = vmatprep.subr.bf16.mxu0 0
        %308 = vmatpush1.bf16.msra.mxu0 0
        %309 = vmatprep.subr.bf16.mxu0 0
        %310 = vmatpush1.bf16.msra.mxu0 0
        %311 = vmatprep.subr.bf16.mxu0 0
        %312 = vmatpush1.bf16.msra.mxu0 0
        %313 = vmatprep.subr.bf16.mxu0 0
        %314 = vmatpush1.bf16.msra.mxu0 0
        %315 = vmatprep.subr.bf16.mxu0 0
        %316 = vmatpush1.bf16.msra.mxu0 %v296
        %317 = vmatprep.subr.bf16.mxu0 0
        %318 = vmatpush1.bf16.msra.mxu0 %v295
        %319 = vmatprep.subr.bf16.mxu0 0
        %320 = vmatpush2.bf16.msra.mxu0 0
        %321 = vmatprep.subr.bf16.mxu0 0
        %322 = vmatpush2.bf16.msra.mxu0 0
        %323 = vmatprep.subr.bf16.mxu0 0
        %324 = vmatpush2.bf16.msra.mxu0 0
        %325 = vmatprep.subr.bf16.mxu0 0
        %326 = vmatpush2.bf16.msra.mxu0 0
        %327 = vmatprep.subr.bf16.mxu0 0
        %328 = vmatpush2.bf16.msra.mxu0 0
        %329 = vmatprep.subr.bf16.mxu0 0
        %330 = vmatpush2.bf16.msra.mxu0 0
        %331 = vmatprep.subr.bf16.mxu0 0
        %332 = vmatpush2.bf16.msra.mxu0 0
        %333 = vmatprep.subr.bf16.mxu0 0
        %334 = vmatpush2.bf16.msra.mxu0 0
        %335 = vmatprep.mubr.bf16.mxu0 0
        %336 = vmatmul.mubr.bf16.gmra.mxu0 %v301
        %v337 = vpop.f32.mrf.mxu0
        %v338 = vadd.f32 %v285, %v337
        %v339 = vpop.f32.mrf.mxu0
        %v340 = vpop.f32.mrf.mxu0
        %v341 = vpop.f32.mrf.mxu0
        %342 = vdwg.mxu0
        %v343 = vmax.f32 %v338, 0.0
        %v344 = vpack.c.bf16 %v343, %v343
        %v345 = vld [vmem:[%s3] sm:$0xf]
        %v346 = vld [vmem:[%s3 + $0x4] sm:$0xf]
        %v347 = vld [vmem:[%s3 + $0x8] sm:$0xf]
        %v348 = vld [vmem:[%s3 + $0xc] sm:$0xf]
        %v349 = vld [vmem:[%s3 + $0x10] sm:$0xf]
        %v350 = vld [vmem:[%s3 + $0x14] sm:$0xf]
        %v351 = vld [vmem:[%s3 + $0x18] sm:$0xf]
        %v352 = vld [vmem:[%s3 + $0x1c] sm:$0xf]
        %v353 = vld [vmem:[%s4] sm:$0x1]
        %v355 = vlaneseq
        %v356 = vshrl.u32 %v355, 7
        %v357 = vsub.s32 0, %v356
        %v358 = vrot.slane %v353, %v357
        %v368 = vunpack.c.l.b16 %v345
        %v369 = vunpack.c.l.b16 %v346
        %v370 = vunpack.c.l.b16 %v347
        %v371 = vunpack.c.l.b16 %v348
        %v372 = vunpack.c.l.b16 %v349
        %v373 = vunpack.c.l.b16 %v350
        %v374 = vunpack.c.l.b16 %v351
        %v375 = vunpack.c.l.b16 %v352
        %v376 = vpack.c.b16 %v369, %v368
        %v377 = vpack.c.b16 %v371, %v370
        %v378 = vpack.c.b16 %v373, %v372
        %v379 = vpack.c.b16 %v375, %v374
        %vm384 = vcmask 523264
        %v386 = vsel %vm384, %v344, 0
        %388 = vmatprep.subr.bf16.mxu0 0
        %389 = vmatpush1.bf16.msra.mxu0 0
        %390 = vmatprep.subr.bf16.mxu0 0
        %391 = vmatpush1.bf16.msra.mxu0 0
        %392 = vmatprep.subr.bf16.mxu0 0
        %393 = vmatpush1.bf16.msra.mxu0 0
        %394 = vmatprep.subr.bf16.mxu0 0
        %395 = vmatpush1.bf16.msra.mxu0 0
        %396 = vmatprep.subr.bf16.mxu0 0
        %397 = vmatpush1.bf16.msra.mxu0 %v379
        %398 = vmatprep.subr.bf16.mxu0 0
        %399 = vmatpush1.bf16.msra.mxu0 %v378
        %400 = vmatprep.subr.bf16.mxu0 0
        %401 = vmatpush1.bf16.msra.mxu0 %v377
        %402 = vmatprep.subr.bf16.mxu0 0
        %403 = vmatpush1.bf16.msra.mxu0 %v376
        %404 = vmatprep.subr.bf16.mxu0 0
        %405 = vmatpush2.bf16.msra.mxu0 0
        %406 = vmatprep.subr.bf16.mxu0 0
        %407 = vmatpush2.bf16.msra.mxu0 0
        %408 = vmatprep.subr.bf16.mxu0 0
        %409 = vmatpush2.bf16.msra.mxu0 0
        %410 = vmatprep.subr.bf16.mxu0 0
        %411 = vmatpush2.bf16.msra.mxu0 0
        %412 = vmatprep.subr.bf16.mxu0 0
        %413 = vmatpush2.bf16.msra.mxu0 0
        %414 = vmatprep.subr.bf16.mxu0 0
        %415 = vmatpush2.bf16.msra.mxu0 0
        %416 = vmatprep.subr.bf16.mxu0 0
        %417 = vmatpush2.bf16.msra.mxu0 0
        %418 = vmatprep.subr.bf16.mxu0 0
        %419 = vmatpush2.bf16.msra.mxu0 0
        %420 = vmatprep.mubr.bf16.mxu0 0
        %421 = vmatmul.mubr.bf16.gmra.mxu0 %v386
        %v422 = vpop.f32.mrf.mxu0
        %v423 = vadd.f32 %v358, %v422
        %v424 = vpop.f32.mrf.mxu0
        %v425 = vpop.f32.mrf.mxu0
        %v426 = vpop.f32.mrf.mxu0
        %427 = vdwg.mxu0
        %v428 = vmax.f32 %v423, 0.0
        %v429 = vpack.c.bf16 %v428, %v428
        %v430 = vld [vmem:[%s5] sm:$0xf]
        %v431 = vld [vmem:[%s5 + $0x4] sm:$0xf]
        %v432 = vld [vmem:[%s5 + $0x8] sm:$0xf]
        %v433 = vld [vmem:[%s5 + $0xc] sm:$0xf]
        %v434 = vld [vmem:[%s6] sm:$0x1]
        %v436 = vlaneseq
        %v437 = vshrl.u32 %v436, 7
        %v438 = vsub.s32 0, %v437
        %v439 = vrot.slane %v434, %v438
        %v445 = vunpack.c.l.b16 %v430
        %v446 = vunpack.c.l.b16 %v431
        %v447 = vunpack.c.l.b16 %v432
        %v448 = vunpack.c.l.b16 %v433
        %v449 = vpack.c.b16 %v446, %v445
        %v450 = vpack.c.b16 %v448, %v447
        %v454 = vsel %vm299, %v429, 0
        %456 = vmatprep.subr.bf16.mxu0 0
        %457 = vmatpush1.bf16.msra.mxu0 0
        %458 = vmatprep.subr.bf16.mxu0 0
        %459 = vmatpush1.bf16.msra.mxu0 0
        %460 = vmatprep.subr.bf16.mxu0 0
        %461 = vmatpush1.bf16.msra.mxu0 0
        %462 = vmatprep.subr.bf16.mxu0 0
        %463 = vmatpush1.bf16.msra.mxu0 0
        %464 = vmatprep.subr.bf16.mxu0 0
        %465 = vmatpush1.bf16.msra.mxu0 0
        %466 = vmatprep.subr.bf16.mxu0 0
        %467 = vmatpush1.bf16.msra.mxu0 0
        %468 = vmatprep.subr.bf16.mxu0 0
        %469 = vmatpush1.bf16.msra.mxu0 %v450
        %470 = vmatprep.subr.bf16.mxu0 0
        %471 = vmatpush1.bf16.msra.mxu0 %v449
        %472 = vmatprep.subr.bf16.mxu0 0
        %473 = vmatpush2.bf16.msra.mxu0 0
        %474 = vmatprep.subr.bf16.mxu0 0
        %475 = vmatpush2.bf16.msra.mxu0 0
        %476 = vmatprep.subr.bf16.mxu0 0
        %477 = vmatpush2.bf16.msra.mxu0 0
        %478 = vmatprep.subr.bf16.mxu0 0
        %479 = vmatpush2.bf16.msra.mxu0 0
        %480 = vmatprep.subr.bf16.mxu0 0
        %481 = vmatpush2.bf16.msra.mxu0 0
        %482 = vmatprep.subr.bf16.mxu0 0
        %483 = vmatpush2.bf16.msra.mxu0 0
        %484 = vmatprep.subr.bf16.mxu0 0
        %485 = vmatpush2.bf16.msra.mxu0 0
        %486 = vmatprep.subr.bf16.mxu0 0
        %487 = vmatpush2.bf16.msra.mxu0 0
        %488 = vmatprep.mubr.bf16.mxu0 0
        %489 = vmatmul.mubr.bf16.gmra.mxu0 %v454
        %v490 = vpop.f32.mrf.mxu0
        %v491 = vadd.f32 %v439, %v490
        %v492 = vpop.f32.mrf.mxu0
        %v493 = vpop.f32.mrf.mxu0
        %v494 = vpop.f32.mrf.mxu0
        %495 = vdwg.mxu0
        %496 = vmax.xlane.f32.xlu0 %v491
        %v497 = vpop.xlane.xlu0 %496
        %v498 = vsub.f32 %v491, %v497
        %v499 = vmul.f32 %v498, 1.442695
        %v500 = vpow.pop %v499
        %501 = vadd.xlane.f32.xlu0 %v500
        %v502 = vpop.xlane.xlu0 %501
        %v503 = vlog2.pop %v502
        %v504 = vmul.f32 %v503, 0.6931472
        %v505 = vsub.f32 %v498, %v504
        %506 = vst [vmem:[%s269] sm:$0xff] %v505
        %s507 = sand.u32 %s181, 1
        %s508 = scalar_lea.sflag [#allocation3], %s507
        %s509 = sand.u32 %s181, 1
        %s510 = smul.addr %s509, 8
        %s511 = scalar_lea.vmem [#allocation2], %s510
        // Predicated region
        $region49: #{tpu_custom_call.1} parent=47 // pred_check
          %p512 = pneg %p191
        $region50: #{tpu_custom_call.1} parent=47 // pred_check_branch
          %514 = sbr.rel (%p512) target = $region52
        $region51: #{tpu_custom_call.1} parent=47 // pred_region
          %s516 = ssub.s32 128, 128
          %517 = vsyncadd %s508, %s516
          %s518 = smul.addr %s21, 128
          %s519 = scalar_lea.hbm %s7, %s518
          %s521 = sshll.u32 %s511, 4
          %s522 = int_to_ptr.vmem [resolvable:$true] %s521
          %524 = dma.vmem_to_hbm [thread:$0]  %s522, 128, %s519, %s508
        $region52: #{tpu_custom_call.1} parent=47 // pred_fallthru
          _
      $region48: #{tpu_custom_call.1} parent=5 // pred_fallthru
        _
      %p525 = scmp.le.s32.totalorder 2, %s16
      // Predicated region
      $region53: #{tpu_custom_call.1} parent=5 // pred_check
        %p526 = pneg %p525
      $region54: #{tpu_custom_call.1} parent=5 // pred_check_branch
        %528 = sbr.rel (%p526) target = $region56
      $region55: #{tpu_custom_call.1} parent=5 // pred_region
        %s529 = ssub.s32 %s16, 2
        // Predicated region
        $region57: #{tpu_custom_call.1} parent=55 // pred_check
          %p530 = pneg %p197
        $region58: #{tpu_custom_call.1} parent=55 // pred_check_branch
          %532 = sbr.rel (%p530) target = $region60
        $region59: #{tpu_custom_call.1} parent=55 // pred_region
          %s533 = sand.u32 %s182, 1
          %s534 = scalar_lea.sflag [#allocation3], %s533
          %s535 = sand.u32 %s182, 1
          %s536 = smul.addr %s535, 8
          %s537 = scalar_lea.vmem [#allocation2], %s536
          %538 = dma.done %s534, 128
        $region60: #{tpu_custom_call.1} parent=55 // pred_fallthru
          _
      $region56: #{tpu_custom_call.1} parent=5 // pred_fallthru
        _
    $region6: #{tpu_custom_call.1} parent=1 // loop_footer
      %s20 = sadd.s32 1, %s16
    $region7: #{tpu_custom_call.1} parent=1 // loop_footer_branch
      %15 = sbr.rel target = $region3
    $region8: #{tpu_custom_call.1} parent=1 // loop_exit
      _
    %539 = vsyncpa [#allocation3], 1
    %s540 = scalar_lea.sflag [#allocation3], 1
    %541 = vsyncpa %s540, 1

// kernel: tpu_custom_call.1
$region0: #{tpu_custom_call.1}
  #allocation0 [shape = 'u32[]', space=smem, size = 0x4, offset = 0x4, fixed_abs, tag = 'smem constant byte address 0x4 - core index']
  #allocation1 [shape = 'u32[144,128]{1,0:T(1,128)}', space=vmem, size = 0x12000, scoped, tag = 'internal scratch']
  %s0 = inlined_call_operand.vmem [shape: bf16[16,32], index: 0, kind: input, shape index: {}]
  %s1 = inlined_call_operand.vmem [shape: bf16[32,64], index: 1, kind: input, shape index: {}]
  %s2 = inlined_call_operand.vmem [shape: f32[1,64], index: 2, kind: input, shape index: {}]
  %s3 = inlined_call_operand.vmem [shape: bf16[64,32], index: 3, kind: input, shape index: {}]
  %s4 = inlined_call_operand.vmem [shape: f32[1,32], index: 4, kind: input, shape index: {}]
  %s5 = inlined_call_operand.vmem [shape: bf16[32,128], index: 5, kind: input, shape index: {}]
  %s6 = inlined_call_operand.vmem [shape: f32[1,128], index: 6, kind: input, shape index: {}]
  %s7 = inlined_call_operand.hbm [shape: f32[16,128], index: 7, kind: output, shape index: {}]
  %s8 = sld [smem:[#allocation0]]
  $region61: #{tpu_custom_call.1} parent=0
    _
  %s10 = ssub.s32 1, %s8
  %s11 = scalar_select 0, %s10, %s8
  $region1: #{tpu_custom_call.1} parent=0
    #allocation2 [shape = 'u8[8192]{0}', space=vmem, size = 0x2000, scoped, tag = 'output window, operand 0']
    #allocation3 [shape = 's32[2]{0}', space=sflag, size = 0x8, scoped, tag = 'scoped memory for tpu_custom_call.1']
    %12 = vsyncpa [#allocation3], 0
    %s13 = scalar_lea.sflag [#allocation3], 1
    %14 = vsyncpa %s13, 0
    loop: start=0, step=1, limit=4
    $region2: #{tpu_custom_call.1} parent=1 // loop_pre_header
      _
    $region3: #{tpu_custom_call.1} parent=1 // loop_header
      %s16 = sphi 0, %s20
      %p17 = scmp.ge.s32.totalorder %s16, 4
      %s26 = sphi 0, %s28
      %s29 = sphi 0, %s26
      %s30 = sphi 0, %s29
      %s46 = sphi 0, %s30
      %s50 = sphi 0, %s50
      %s52 = sphi 0, %s50
      %s53 = sphi 0, %s52
      %s67 = sphi 0, %s53
      %s71 = sphi 0, %s71
      %s73 = sphi 0, %s71
      %s74 = sphi 0, %s73
      %s88 = sphi 0, %s74
      %s92 = sphi 0, %s92
      %s94 = sphi 0, %s92
      %s95 = sphi 0, %s94
      %s109 = sphi 0, %s95
      %s113 = sphi 0, %s113
      %s115 = sphi 0, %s113
      %s116 = sphi 0, %s115
      %s130 = sphi 0, %s116
      %s134 = sphi 0, %s134
      %s136 = sphi 0, %s134
      %s137 = sphi 0, %s136
      %s151 = sphi 0, %s137
      %s155 = sphi 0, %s155
      %s157 = sphi 0, %s155
      %s158 = sphi 0, %s157
      %s172 = sphi 0, %s158
      %s178 = sphi 0, %s180
      %s181 = sphi 0, %s178
      %s182 = sphi 0, %s181
      %s198 = sphi 0, %s182
    $region4: #{tpu_custom_call.1} parent=1 // loop_header_branch
      %19 = sbr.rel (%p17) target = $region8
    $region5: #{tpu_custom_call.1} parent=1 // loop_body
      %s21 = ssub.s32 %s16, 1
      %s22 = ssub.s32 %s16, 2
      %s23 = sadd.s32 %s16, 1
      %s24 = ssub.s32 %s16, %s23
      %p25 = scmp.eq.s32.totalorder %s24, 0
      %s27 = sadd.s32 %s26, 1
      %s28 = scalar_select %p25, %s26, %s27
      %p31 = pneg %p25
      %p32 = scmp.eq.s32.totalorder %s16, 1
      %p33 = por %p31, %p32
      %p34 = scmp.ne.s32.totalorder %s26, %s29
      %p35 = scmp.eq.s32.totalorder %s16, 0
      %p36 = por %p34, %p35
      %p37 = scmp.ne.s32.totalorder %s26, %s29
      %p38 = scmp.eq.s32.totalorder %s21, 1
      %p39 = por %p37, %p38
      %p40 = scmp.ne.s32.totalorder %s29, %s30
      %p41 = scmp.eq.s32.totalorder %s21, 0
      %p42 = por %p40, %p41
      %p43 = scmp.ne.s32.totalorder %s29, %s30
      %p44 = scmp.eq.s32.totalorder %s22, 1
      %p45 = por %p43, %p44
      %p47 = scmp.ne.s32.totalorder %s30, %s46
      %p48 = scmp.eq.s32.totalorder %s22, 0
      %p49 = por %p47, %p48
      %s51 = sadd.s32 %s50, 1
      %p54 = scmp.eq.s32.totalorder %s16, 1
      %p55 = scmp.ne.s32.totalorder %s50, %s52
      %p56 = scmp.eq.s32.totalorder %s16, 0
      %p57 = por %p55, %p56
      %p58 = scmp.ne.s32.totalorder %s50, %s52
      %p59 = scmp.eq.s32.totalorder %s21, 1
      %p60 = por %p58, %p59
      %p61 = scmp.ne.s32.totalorder %s52, %s53
      %p62 = scmp.eq.s32.totalorder %s21, 0
      %p63 = por %p61, %p62
      %p64 = scmp.ne.s32.totalorder %s52, %s53
      %p65 = scmp.eq.s32.totalorder %s22, 1
      %p66 = por %p64, %p65
      %p68 = scmp.ne.s32.totalorder %s53, %s67
      %p69 = scmp.eq.s32.totalorder %s22, 0
      %p70 = por %p68, %p69
      %s72 = sadd.s32 %s71, 1
      %p75 = scmp.eq.s32.totalorder %s16, 1
      %p76 = scmp.ne.s32.totalorder %s71, %s73
      %p77 = scmp.eq.s32.totalorder %s16, 0
      %p78 = por %p76, %p77
      %p79 = scmp.ne.s32.totalorder %s71, %s73
      %p80 = scmp.eq.s32.totalorder %s21, 1
      %p81 = por %p79, %p80
      %p82 = scmp.ne.s32.totalorder %s73, %s74
      %p83 = scmp.eq.s32.totalorder %s21, 0
      %p84 = por %p82, %p83
      %p85 = scmp.ne.s32.totalorder %s73, %s74
      %p86 = scmp.eq.s32.totalorder %s22, 1
      %p87 = por %p85, %p86
      %p89 = scmp.ne.s32.totalorder %s74, %s88
      %p90 = scmp.eq.s32.totalorder %s22, 0
      %p91 = por %p89, %p90
      %s93 = sadd.s32 %s92, 1
      %p96 = scmp.eq.s32.totalorder %s16, 1
      %p97 = scmp.ne.s32.totalorder %s92, %s94
      %p98 = scmp.eq.s32.totalorder %s16, 0
      %p99 = por %p97, %p98
      %p100 = scmp.ne.s32.totalorder %s92, %s94
      %p101 = scmp.eq.s32.totalorder %s21, 1
      %p102 = por %p100, %p101
      %p103 = scmp.ne.s32.totalorder %s94, %s95
      %p104 = scmp.eq.s32.totalorder %s21, 0
      %p105 = por %p103, %p104
      %p106 = scmp.ne.s32.totalorder %s94, %s95
      %p107 = scmp.eq.s32.totalorder %s22, 1
      %p108 = por %p106, %p107
      %p110 = scmp.ne.s32.totalorder %s95, %s109
      %p111 = scmp.eq.s32.totalorder %s22, 0
      %p112 = por %p110, %p111
      %s114 = sadd.s32 %s113, 1
      %p117 = scmp.eq.s32.totalorder %s16, 1
      %p118 = scmp.ne.s32.totalorder %s113, %s115
      %p119 = scmp.eq.s32.totalorder %s16, 0
      %p120 = por %p118, %p119
      %p121 = scmp.ne.s32.totalorder %s113, %s115
      %p122 = scmp.eq.s32.totalorder %s21, 1
      %p123 = por %p121, %p122
      %p124 = scmp.ne.s32.totalorder %s115, %s116
      %p125 = scmp.eq.s32.totalorder %s21, 0
      %p126 = por %p124, %p125
      %p127 = scmp.ne.s32.totalorder %s115, %s116
      %p128 = scmp.eq.s32.totalorder %s22, 1
      %p129 = por %p127, %p128
      %p131 = scmp.ne.s32.totalorder %s116, %s130
      %p132 = scmp.eq.s32.totalorder %s22, 0
      %p133 = por %p131, %p132
      %s135 = sadd.s32 %s134, 1
      %p138 = scmp.eq.s32.totalorder %s16, 1
      %p139 = scmp.ne.s32.totalorder %s134, %s136
      %p140 = scmp.eq.s32.totalorder %s16, 0
      %p141 = por %p139, %p140
      %p142 = scmp.ne.s32.totalorder %s134, %s136
      %p143 = scmp.eq.s32.totalorder %s21, 1
      %p144 = por %p142, %p143
      %p145 = scmp.ne.s32.totalorder %s136, %s137
      %p146 = scmp.eq.s32.totalorder %s21, 0
      %p147 = por %p145, %p146
      %p148 = scmp.ne.s32.totalorder %s136, %s137
      %p149 = scmp.eq.s32.totalorder %s22, 1
      %p150 = por %p148, %p149
      %p152 = scmp.ne.s32.totalorder %s137, %s151
      %p153 = scmp.eq.s32.totalorder %s22, 0
      %p154 = por %p152, %p153
      %s156 = sadd.s32 %s155, 1
      %p159 = scmp.eq.s32.totalorder %s16, 1
      %p160 = scmp.ne.s32.totalorder %s155, %s157
      %p161 = scmp.eq.s32.totalorder %s16, 0
      %p162 = por %p160, %p161
      %p163 = scmp.ne.s32.totalorder %s155, %s157
      %p164 = scmp.eq.s32.totalorder %s21, 1
      %p165 = por %p163, %p164
      %p166 = scmp.ne.s32.totalorder %s157, %s158
      %p167 = scmp.eq.s32.totalorder %s21, 0
      %p168 = por %p166, %p167
      %p169 = scmp.ne.s32.totalorder %s157, %s158
      %p170 = scmp.eq.s32.totalorder %s22, 1
      %p171 = por %p169, %p170
      %p173 = scmp.ne.s32.totalorder %s158, %s172
      %p174 = scmp.eq.s32.totalorder %s22, 0
      %p175 = por %p173, %p174
      %s176 = ssub.s32 %s16, %s23
      %p177 = scmp.eq.s32.totalorder %s176, 0
      %s179 = sadd.s32 %s178, 1
      %s180 = scalar_select %p177, %s178, %s179
      %p183 = pneg %p177
      %p184 = scmp.eq.s32.totalorder %s16, 1
      %p185 = por %p183, %p184
      %p186 = scmp.ne.s32.totalorder %s178, %s181
      %p187 = scmp.eq.s32.totalorder %s16, 0
      %p188 = por %p186, %p187
      %p189 = scmp.ne.s32.totalorder %s178, %s181
      %p190 = scmp.eq.s32.totalorder %s21, 1
      %p191 = por %p189, %p190
      %p192 = scmp.ne.s32.totalorder %s181, %s182
      %p193 = scmp.eq.s32.totalorder %s21, 0
      %p194 = por %p192, %p193
      %p195 = scmp.ne.s32.totalorder %s181, %s182
      %p196 = scmp.eq.s32.totalorder %s22, 1
      %p197 = por %p195, %p196
      %p199 = scmp.ne.s32.totalorder %s182, %s198
      %p200 = scmp.eq.s32.totalorder %s22, 0
      %p201 = por %p199, %p200
      %p202 = scmp.le.s32.totalorder 1, %s16
      %p203 = scmp.lt.s32.totalorder %s16, 3
      %p204 = pnand %p202, %p203
      %p205 = pneg %p204
      // Predicated region
      $region9: #{tpu_custom_call.1} parent=5 // pred_check
        _
      $region10: #{tpu_custom_call.1} parent=5 // pred_check_branch
        %207 = sbr.rel (%p204) target = $region12
      $region11: #{tpu_custom_call.1} parent=5 // pred_region
        %s208 = ssub.s32 %s16, 1
        // Predicated region
        $region13: #{tpu_custom_call.1} parent=11 // pred_check
          %p209 = pneg %p63
        $region14: #{tpu_custom_call.1} parent=11 // pred_check_branch
          %211 = sbr.rel (%p209) target = $region16
        $region15: #{tpu_custom_call.1} parent=11 // pred_region
          _
        $region16: #{tpu_custom_call.1} parent=11 // pred_fallthru
          _
        // Predicated region
        $region17: #{tpu_custom_call.1} parent=11 // pred_check
          %p212 = pneg %p84
        $region18: #{tpu_custom_call.1} parent=11 // pred_check_branch
          %214 = sbr.rel (%p212) target = $region20
        $region19: #{tpu_custom_call.1} parent=11 // pred_region
          _
        $region20: #{tpu_custom_call.1} parent=11 // pred_fallthru
          _
        // Predicated region
        $region21: #{tpu_custom_call.1} parent=11 // pred_check
          %p215 = pneg %p105
        $region22: #{tpu_custom_call.1} parent=11 // pred_check_branch
          %217 = sbr.rel (%p215) target = $region24
        $region23: #{tpu_custom_call.1} parent=11 // pred_region
          _
        $region24: #{tpu_custom_call.1} parent=11 // pred_fallthru
          _
        // Predicated region
        $region25: #{tpu_custom_call.1} parent=11 // pred_check
          %p218 = pneg %p126
        $region26: #{tpu_custom_call.1} parent=11 // pred_check_branch
          %220 = sbr.rel (%p218) target = $region28
        $region27: #{tpu_custom_call.1} parent=11 // pred_region
          _
        $region28: #{tpu_custom_call.1} parent=11 // pred_fallthru
          _
        // Predicated region
        $region29: #{tpu_custom_call.1} parent=11 // pred_check
          %p221 = pneg %p147
        $region30: #{tpu_custom_call.1} parent=11 // pred_check_branch
          %223 = sbr.rel (%p221) target = $region32
        $region31: #{tpu_custom_call.1} parent=11 // pred_region
          _
        $region32: #{tpu_custom_call.1} parent=11 // pred_fallthru
          _
        // Predicated region
        $region33: #{tpu_custom_call.1} parent=11 // pred_check
          %p224 = pneg %p168
        $region34: #{tpu_custom_call.1} parent=11 // pred_check_branch
          %226 = sbr.rel (%p224) target = $region36
        $region35: #{tpu_custom_call.1} parent=11 // pred_region
          _
        $region36: #{tpu_custom_call.1} parent=11 // pred_fallthru
          _
      $region12: #{tpu_custom_call.1} parent=5 // pred_fallthru
        _
      %p227 = scmp.lt.s32.totalorder %s16, 2
      // Predicated region
      $region37: #{tpu_custom_call.1} parent=5 // pred_check
        %p228 = pneg %p227
      $region38: #{tpu_custom_call.1} parent=5 // pred_check_branch
        %230 = sbr.rel (%p228) target = $region40
      $region39: #{tpu_custom_call.1} parent=5 // pred_region
        // Predicated region
        $region41: #{tpu_custom_call.1} parent=39 // pred_check
          %p231 = pneg %p36
        $region42: #{tpu_custom_call.1} parent=39 // pred_check_branch
          %233 = sbr.rel (%p231) target = $region44
        $region43: #{tpu_custom_call.1} parent=39 // pred_region
          %p234 = scmp.lt.s32.totalorder %s16, 1
          %s235 = scalar_select %p234, %s16, 1
          %s236 = smul.addr %s235, 4
          %s237 = scalar_lea.vmem %s0, %s236
        $region44: #{tpu_custom_call.1} parent=39 // pred_fallthru
          _
      $region40: #{tpu_custom_call.1} parent=5 // pred_fallthru
        _
      %p238 = scmp.le.s32.totalorder 1, %s16
      %p239 = scmp.lt.s32.totalorder %s16, 3
      %p240 = pnand %p238, %p239
      %p241 = pneg %p240
      // Predicated region
      $region45: #{tpu_custom_call.1} parent=5 // pred_check
        _
      $region46: #{tpu_custom_call.1} parent=5 // pred_check_branch
        %243 = sbr.rel (%p240) target = $region48
      $region47: #{tpu_custom_call.1} parent=5 // pred_region
        %s244 = ssub.s32 %s16, 1
        %p245 = scmp.lt.s32.totalorder %s21, 1
        %s246 = scalar_select %p245, %s21, 1
        %s247 = smul.addr %s246, 4
        %s248 = scalar_lea.vmem %s0, %s247
        %p249 = pneg %p42
        %p250 = pneg %p39
        %p251 = pneg %p63
        %p252 = pneg %p60
        %p253 = pneg %p84
        %p254 = pneg %p81
        %p255 = pneg %p105
        %p256 = pneg %p102
        %p257 = pneg %p126
        %p258 = pneg %p123
        %p259 = pneg %p147
        %p260 = pneg %p144
        %p261 = pneg %p168
        %p262 = pneg %p165
        %p263 = pneg %p194
        %p264 = pneg %p191
        %s265 = sand.u32 %s181, 1
        %s266 = scalar_lea.sflag [#allocation3], %s265
        %s267 = sand.u32 %s181, 1
        %s268 = smul.addr %s267, 8
        %s269 = scalar_lea.vmem [#allocation2], %s268
        %p270 = scmp.lt.s32.totalorder %s21, 1
        %s271 = scalar_select %p270, %s21, 1
        %s272 = smul.addr %s271, 4
        %s273 = scalar_lea.vmem %s0, %s272
        %v275 = vld [vmem:[%s273] sm:$0xf]
        %v276 = vld [vmem:[%s1] sm:$0xf]
        %v277 = vld [vmem:[%s1 + $0x4] sm:$0xf]
        %v278 = vld [vmem:[%s1 + $0x8] sm:$0xf]
        %v279 = vld [vmem:[%s1 + $0xc] sm:$0xf]
        %v280 = vld [vmem:[%s2] sm:$0x1]
        %v282 = vlaneseq
        %v283 = vshrl.u32 %v282, 7
        %v284 = vsub.s32 0, %v283
        %v285 = vrot.slane %v280, %v284
        %v291 = vunpack.c.l.b16 %v276
        %v292 = vunpack.c.l.b16 %v277
        %v293 = vunpack.c.l.b16 %v278
        %v294 = vunpack.c.l.b16 %v279
        %v295 = vpack.c.b16 %v292, %v291
        %v296 = vpack.c.b16 %v294, %v293
        %vm299 = vcmask 261120
        %v301 = vsel %vm299, %v275, 0
        %303 = vmatprep.subr.bf16.mxu0 0
        %304 = vmatpush1.bf16.msra.mxu0 0
        %305 = vmatprep.subr.bf16.mxu0 0
        %306 = vmatpush1.bf16.msra.mxu0 0
        %307 = vmatprep.subr.bf16.mxu0 0
        %308 = vmatpush1.bf16.msra.mxu0 0
        %309 = vmatprep.subr.bf16.mxu0 0
        %310 = vmatpush1.bf16.msra.mxu0 0
        %311 = vmatprep.subr.bf16.mxu0 0
        %312 = vmatpush1.bf16.msra.mxu0 0
        %313 = vmatprep.subr.bf16.mxu0 0
        %314 = vmatpush1.bf16.msra.mxu0 0
        %315 = vmatprep.subr.bf16.mxu0 0
        %316 = vmatpush1.bf16.msra.mxu0 %v296
        %317 = vmatprep.subr.bf16.mxu0 0
        %318 = vmatpush1.bf16.msra.mxu0 %v295
        %319 = vmatprep.subr.bf16.mxu0 0
        %320 = vmatpush2.bf16.msra.mxu0 0
        %321 = vmatprep.subr.bf16.mxu0 0
        %322 = vmatpush2.bf16.msra.mxu0 0
        %323 = vmatprep.subr.bf16.mxu0 0
        %324 = vmatpush2.bf16.msra.mxu0 0
        %325 = vmatprep.subr.bf16.mxu0 0
        %326 = vmatpush2.bf16.msra.mxu0 0
        %327 = vmatprep.subr.bf16.mxu0 0
        %328 = vmatpush2.bf16.msra.mxu0 0
        %329 = vmatprep.subr.bf16.mxu0 0
        %330 = vmatpush2.bf16.msra.mxu0 0
        %331 = vmatprep.subr.bf16.mxu0 0
        %332 = vmatpush2.bf16.msra.mxu0 0
        %333 = vmatprep.subr.bf16.mxu0 0
        %334 = vmatpush2.bf16.msra.mxu0 0
        %335 = vmatprep.mubr.bf16.mxu0 0
        %336 = vmatmul.mubr.bf16.gmra.mxu0 %v301
        %v337 = vpop.f32.mrf.mxu0
        %v338 = vadd.f32 %v285, %v337
        %v339 = vpop.f32.mrf.mxu0
        %v340 = vpop.f32.mrf.mxu0
        %v341 = vpop.f32.mrf.mxu0
        %342 = vdwg.mxu0
        %v343 = vmax.f32 %v338, 0.0
        %v344 = vpack.c.bf16 %v343, %v343
        %v345 = vld [vmem:[%s3] sm:$0xf]
        %v346 = vld [vmem:[%s3 + $0x4] sm:$0xf]
        %v347 = vld [vmem:[%s3 + $0x8] sm:$0xf]
        %v348 = vld [vmem:[%s3 + $0xc] sm:$0xf]
        %v349 = vld [vmem:[%s3 + $0x10] sm:$0xf]
        %v350 = vld [vmem:[%s3 + $0x14] sm:$0xf]
        %v351 = vld [vmem:[%s3 + $0x18] sm:$0xf]
        %v352 = vld [vmem:[%s3 + $0x1c] sm:$0xf]
        %v353 = vld [vmem:[%s4] sm:$0x1]
        %v355 = vlaneseq
        %v356 = vshrl.u32 %v355, 7
        %v357 = vsub.s32 0, %v356
        %v358 = vrot.slane %v353, %v357
        %v368 = vunpack.c.l.b16 %v345
        %v369 = vunpack.c.l.b16 %v346
        %v370 = vunpack.c.l.b16 %v347
        %v371 = vunpack.c.l.b16 %v348
        %v372 = vunpack.c.l.b16 %v349
        %v373 = vunpack.c.l.b16 %v350
        %v374 = vunpack.c.l.b16 %v351
        %v375 = vunpack.c.l.b16 %v352
        %v376 = vpack.c.b16 %v369, %v368
        %v377 = vpack.c.b16 %v371, %v370
        %v378 = vpack.c.b16 %v373, %v372
        %v379 = vpack.c.b16 %v375, %v374
        %vm384 = vcmask 523264
        %v386 = vsel %vm384, %v344, 0
        %388 = vmatprep.subr.bf16.mxu0 0
        %389 = vmatpush1.bf16.msra.mxu0 0
        %390 = vmatprep.subr.bf16.mxu0 0
        %391 = vmatpush1.bf16.msra.mxu0 0
        %392 = vmatprep.subr.bf16.mxu0 0
        %393 = vmatpush1.bf16.msra.mxu0 0
        %394 = vmatprep.subr.bf16.mxu0 0
        %395 = vmatpush1.bf16.msra.mxu0 0
        %396 = vmatprep.subr.bf16.mxu0 0
        %397 = vmatpush1.bf16.msra.mxu0 %v379
        %398 = vmatprep.subr.bf16.mxu0 0
        %399 = vmatpush1.bf16.msra.mxu0 %v378
        %400 = vmatprep.subr.bf16.mxu0 0
        %401 = vmatpush1.bf16.msra.mxu0 %v377
        %402 = vmatprep.subr.bf16.mxu0 0
        %403 = vmatpush1.bf16.msra.mxu0 %v376
        %404 = vmatprep.subr.bf16.mxu0 0
        %405 = vmatpush2.bf16.msra.mxu0 0
        %406 = vmatprep.subr.bf16.mxu0 0
        %407 = vmatpush2.bf16.msra.mxu0 0
        %408 = vmatprep.subr.bf16.mxu0 0
        %409 = vmatpush2.bf16.msra.mxu0 0
        %410 = vmatprep.subr.bf16.mxu0 0
        %411 = vmatpush2.bf16.msra.mxu0 0
        %412 = vmatprep.subr.bf16.mxu0 0
        %413 = vmatpush2.bf16.msra.mxu0 0
        %414 = vmatprep.subr.bf16.mxu0 0
        %415 = vmatpush2.bf16.msra.mxu0 0
        %416 = vmatprep.subr.bf16.mxu0 0
        %417 = vmatpush2.bf16.msra.mxu0 0
        %418 = vmatprep.subr.bf16.mxu0 0
        %419 = vmatpush2.bf16.msra.mxu0 0
        %420 = vmatprep.mubr.bf16.mxu0 0
        %421 = vmatmul.mubr.bf16.gmra.mxu0 %v386
        %v422 = vpop.f32.mrf.mxu0
        %v423 = vadd.f32 %v358, %v422
        %v424 = vpop.f32.mrf.mxu0
        %v425 = vpop.f32.mrf.mxu0
        %v426 = vpop.f32.mrf.mxu0
        %427 = vdwg.mxu0
        %v428 = vmax.f32 %v423, 0.0
        %v429 = vpack.c.bf16 %v428, %v428
        %v430 = vld [vmem:[%s5] sm:$0xf]
        %v431 = vld [vmem:[%s5 + $0x4] sm:$0xf]
        %v432 = vld [vmem:[%s5 + $0x8] sm:$0xf]
        %v433 = vld [vmem:[%s5 + $0xc] sm:$0xf]
        %v434 = vld [vmem:[%s6] sm:$0x1]
        %v436 = vlaneseq
        %v437 = vshrl.u32 %v436, 7
        %v438 = vsub.s32 0, %v437
        %v439 = vrot.slane %v434, %v438
        %v445 = vunpack.c.l.b16 %v430
        %v446 = vunpack.c.l.b16 %v431
        %v447 = vunpack.c.l.b16 %v432
        %v448 = vunpack.c.l.b16 %v433
        %v449 = vpack.c.b16 %v446, %v445
        %v450 = vpack.c.b16 %v448, %v447
        %v454 = vsel %vm299, %v429, 0
        %456 = vmatprep.subr.bf16.mxu0 0
        %457 = vmatpush1.bf16.msra.mxu0 0
        %458 = vmatprep.subr.bf16.mxu0 0
        %459 = vmatpush1.bf16.msra.mxu0 0
        %460 = vmatprep.subr.bf16.mxu0 0
        %461 = vmatpush1.bf16.msra.mxu0 0
        %462 = vmatprep.subr.bf16.mxu0 0
        %463 = vmatpush1.bf16.msra.mxu0 0
        %464 = vmatprep.subr.bf16.mxu0 0
        %465 = vmatpush1.bf16.msra.mxu0 0
        %466 = vmatprep.subr.bf16.mxu0 0
        %467 = vmatpush1.bf16.msra.mxu0 0
        %468 = vmatprep.subr.bf16.mxu0 0
        %469 = vmatpush1.bf16.msra.mxu0 %v450
        %470 = vmatprep.subr.bf16.mxu0 0
        %471 = vmatpush1.bf16.msra.mxu0 %v449
        %472 = vmatprep.subr.bf16.mxu0 0
        %473 = vmatpush2.bf16.msra.mxu0 0
        %474 = vmatprep.subr.bf16.mxu0 0
        %475 = vmatpush2.bf16.msra.mxu0 0
        %476 = vmatprep.subr.bf16.mxu0 0
        %477 = vmatpush2.bf16.msra.mxu0 0
        %478 = vmatprep.subr.bf16.mxu0 0
        %479 = vmatpush2.bf16.msra.mxu0 0
        %480 = vmatprep.subr.bf16.mxu0 0
        %481 = vmatpush2.bf16.msra.mxu0 0
        %482 = vmatprep.subr.bf16.mxu0 0
        %483 = vmatpush2.bf16.msra.mxu0 0
        %484 = vmatprep.subr.bf16.mxu0 0
        %485 = vmatpush2.bf16.msra.mxu0 0
        %486 = vmatprep.subr.bf16.mxu0 0
        %487 = vmatpush2.bf16.msra.mxu0 0
        %488 = vmatprep.mubr.bf16.mxu0 0
        %489 = vmatmul.mubr.bf16.gmra.mxu0 %v454
        %v490 = vpop.f32.mrf.mxu0
        %v491 = vadd.f32 %v439, %v490
        %v492 = vpop.f32.mrf.mxu0
        %v493 = vpop.f32.mrf.mxu0
        %v494 = vpop.f32.mrf.mxu0
        %495 = vdwg.mxu0
        %496 = vmax.xlane.f32.xlu0 %v491
        %v497 = vpop.xlane.xlu0 %496
        %v498 = vsub.f32 %v491, %v497
        %v499 = vmul.f32 %v498, 1.442695
        %v500 = vpow.pop %v499
        %501 = vadd.xlane.f32.xlu0 %v500
        %v502 = vpop.xlane.xlu0 %501
        %v503 = vlog2.pop %v502
        %v504 = vmul.f32 %v503, 0.6931472
        %v505 = vsub.f32 %v498, %v504
        %506 = vst [vmem:[%s269] sm:$0xff] %v505
        %s507 = sand.u32 %s181, 1
        %s508 = scalar_lea.sflag [#allocation3], %s507
        %s509 = sand.u32 %s181, 1
        %s510 = smul.addr %s509, 8
        %s511 = scalar_lea.vmem [#allocation2], %s510
        // Predicated region
        $region49: #{tpu_custom_call.1} parent=47 // pred_check
          %p512 = pneg %p191
        $region50: #{tpu_custom_call.1} parent=47 // pred_check_branch
          %514 = sbr.rel (%p512) target = $region52
        $region51: #{tpu_custom_call.1} parent=47 // pred_region
          %s516 = ssub.s32 128, 128
          %517 = vsyncadd %s508, %s516
          %s518 = smul.addr %s21, 128
          %s519 = scalar_lea.hbm %s7, %s518
          %s521 = sshll.u32 %s511, 4
          %s522 = int_to_ptr.vmem [resolvable:$true] %s521
          %524 = dma.vmem_to_hbm [thread:$0]  %s522, 128, %s519, %s508
        $region52: #{tpu_custom_call.1} parent=47 // pred_fallthru
          _
      $region48: #{tpu_custom_call.1} parent=5 // pred_fallthru
        _
      %p525 = scmp.le.s32.totalorder 2, %s16
      // Predicated region
      $region53: #{tpu_custom_call.1} parent=5 // pred_check
        %p526 = pneg %p525
      $region54: #{tpu_custom_call.1} parent=5 // pred_check_branch
        %528 = sbr.rel (%p526) target = $region56
      $region55: #{tpu_custom_call.1} parent=5 // pred_region
        %s529 = ssub.s32 %s16, 2
        // Predicated region
        $region57: #{tpu_custom_call.1} parent=55 // pred_check
          %p530 = pneg %p197
        $region58: #{tpu_custom_call.1} parent=55 // pred_check_branch
          %532 = sbr.rel (%p530) target = $region60
        $region59: #{tpu_custom_call.1} parent=55 // pred_region
          %s533 = sand.u32 %s182, 1
          %s534 = scalar_lea.sflag [#allocation3], %s533
          %s535 = sand.u32 %s182, 1
          %s536 = smul.addr %s535, 8
          %s537 = scalar_lea.vmem [#allocation2], %s536
          %538 = dma.done %s534, 128
        $region60: #{tpu_custom_call.1} parent=55 // pred_fallthru
          _
      $region56: #{tpu_custom_call.1} parent=5 // pred_fallthru
        _
    $region6: #{tpu_custom_call.1} parent=1 // loop_footer
      %s20 = sadd.s32 1, %s16
    $region7: #{tpu_custom_call.1} parent=1 // loop_footer_branch
      %15 = sbr.rel target = $region3
    $region8: #{tpu_custom_call.1} parent=1 // loop_exit
      _
    %539 = vsyncpa [#allocation3], 1
    %s540 = scalar_lea.sflag [#allocation3], 1
    %541 = vsyncpa %s540, 1

</llo_original>
